<compile_context>
chip_gen: v7x
topology: tpu7x:2x2x1
jax: 0.10.0
libtpu: 0.0.40
codegen_flags: <defaults>
</compile_context>

<pallas_src>
import functools

import jax
import jax.numpy as jnp
from jax import lax
from jax.experimental import pallas as pl
from jax.experimental.pallas import tpu as pltpu


def _basic_block_kernel(B, stride, Ho, Nw, identity, fold_bn, cdt,
                        x_ref, w1_ref, w2_ref, bn_ref, *rest):
    """One grid step = B images processed as a (B*Ho, Nw) row block.

    x_ref : (B, P, Ho, K1)  input rows, channels fused into lanes (dtype cdt).
                            stride=1: P=1 (all rows). stride=2: P=2, phase 0 = even
                            input rows, phase 1 = odd input rows.
    w1_ref: (3*K1, Nw)      conv1 banded weights, dy bands stacked along K.
    w2_ref: (3*Nw, Nw)      conv2 banded weights, dy bands stacked along K.
    bn_ref: (4, Nw)         [scale1, bias1, scale2, bias2] tiled to the lane layout.
    sc_ref: (K1, Nw)        (option-A only) 0/1 shortcut placement matrix.
    o_ref : (B*Ho, Nw)      output rows, lane-dense.
    """
    if identity:
        (o_ref,) = rest
    else:
        sc_ref, o_ref = rest

    M = B * Ho
    K1 = x_ref.shape[-1]
    zx = jnp.zeros((B, 1, K1), cdt)

    # ---- conv1: single MXU matmul.  The three dy-shifted row views (with the H
    # zero-border rows) are concatenated along lanes to form the (M, 3*K1) LHS.
    if stride == 1:
        mid = x_ref[:, 0, :, :]                                      # rows i
        up = jnp.concatenate([zx, mid[:, :Ho - 1]], axis=1)          # rows i-1
        dn = jnp.concatenate([mid[:, 1:], zx], axis=1)               # rows i+1
    else:
        even = x_ref[:, 0, :, :]                                     # rows 2i
        odd = x_ref[:, 1, :, :]                                      # rows 2i+1
        up = jnp.concatenate([zx, odd[:, :Ho - 1]], axis=1)          # rows 2i-1
        mid = even
        dn = odd
    lhs1 = jnp.concatenate([up, mid, dn], axis=-1).reshape(M, 3 * K1)
    acc1 = jnp.dot(lhs1, w1_ref[...], preferred_element_type=jnp.float32)

    # ---- bn1 + relu (scale already folded into w1 on the fast path)
    if fold_bn:
        h1 = jnp.maximum(acc1 + bn_ref[1:2, :], 0.0)
    else:
        h1 = jnp.maximum(acc1 * bn_ref[0:1, :] + bn_ref[1:2, :], 0.0)

    # ---- conv2 (stride 1): same fused single-matmul structure applied to h1.
    h1b = h1.astype(cdt).reshape(B, Ho, Nw)
    zh = jnp.zeros((B, 1, Nw), cdt)
    lhs2 = jnp.concatenate(
        [jnp.concatenate([zh, h1b[:, :Ho - 1]], axis=1),
         h1b,
         jnp.concatenate([h1b[:, 1:], zh], axis=1)],
        axis=-1).reshape(M, 3 * Nw)
    acc2 = jnp.dot(lhs2, w2_ref[...], preferred_element_type=jnp.float32)
    if fold_bn:
        out = acc2 + bn_ref[3:4, :]
    else:
        out = acc2 * bn_ref[2:3, :] + bn_ref[3:4, :]

    # ---- shortcut (`mid` already holds exactly the rows the shortcut needs:
    # all rows for identity, the even (::2) rows for the stride-2 option-A path)
    if identity:
        sc = mid.reshape(M, Nw).astype(jnp.float32)
    else:
        sc = jnp.dot(mid.reshape(M, K1), sc_ref[...],
                     preferred_element_type=jnp.float32)

    # ---- residual add + relu, single lane-dense full-block store
    o_ref[...] = jnp.maximum(out + sc, 0.0).astype(o_ref.dtype)


def _banded_conv_weight(w_oihw, stride, w_in, w_out):
    """Fold the 3 dx taps and the width-direction zero padding of a 3x3 conv into a
    per-dy banded matrix: (3, w_in*Cin, w_out*Cout) with
    band[dy][w*Cin + c, j*Cout + o] = w[o, c, dy, dx] iff w == stride*j + dx - 1."""
    cout, cin = w_oihw.shape[0], w_oihw.shape[1]
    win_idx = jnp.arange(w_in)[:, None]
    jout_idx = jnp.arange(w_out)[None, :]
    bands = []
    for dy in range(3):
        m = jnp.zeros((w_in * cin, w_out * cout), jnp.float32)
        for dx in range(3):
            sel = (win_idx == stride * jout_idx + dx - 1).astype(jnp.float32)
            wco = w_oihw[:, :, dy, dx].T.astype(jnp.float32)             # (cin, cout)
            m = m + jnp.einsum("wj,co->wcjo", sel, wco).reshape(w_in * cin,
                                                                w_out * cout)
        bands.append(m)
    return jnp.stack(bands)                                              # (3, K, N)


def _shortcut_placement(w_in, cin, w_out, cout):
    """0/1 matrix mapping input lane (w*cin + c) -> output lane (j*cout + c + cout//4)
    for w == 2*j  (option-A subsample + channel zero-pad)."""
    pad_c = cout // 4
    sel = (jnp.arange(w_in)[:, None] == 2 * jnp.arange(w_out)[None, :]).astype(jnp.float32)
    emb = (jnp.arange(cout)[None, :] == jnp.arange(cin)[:, None] + pad_c).astype(jnp.float32)
    return jnp.einsum("wj,co->wcjo", sel, emb).reshape(w_in * cin, w_out * cout)


def _pick_batch_block(n, ho, row_bytes, fixed_bytes, vmem_budget, row_align,
                      target_rows=512):
    """Images per grid step: the largest block whose working set fits the VMEM budget
    and whose row count stays at/below ~target_rows (bigger stops paying off and
    starts costing vreg spills), subject to out-block sublane alignment."""
    cands = [b for b in range(1, n + 1)
             if n % b == 0 and (b == n or (b * ho) % row_align == 0)]
    fit = [b for b in cands if fixed_bytes + b * ho * row_bytes <= vmem_budget]
    if not fit:
        return min(cands)
    under = [b for b in fit if b * ho <= target_rows]
    return max(under) if under else min(fit)


def basic_block_forward(x_nchw, params, stride=1, option="A",
                        matmul_dtype=jnp.bfloat16, out_dtype=jnp.float32,
                        batch_block=None, fold_bn=None):
    """Pallas implementation of BasicBlock.forward (eval-mode BN). NCHW in / NCHW out.

    matmul_dtype: dtype of the MXU operands (bf16 default; accumulation, BN, residual
    and ReLU are always f32).  Pass jnp.float32 for exact f32 parity with PyTorch.
    out_dtype:    dtype of the HBM output (use matmul_dtype when chaining blocks to
    halve writeback bytes; f32 default for the final output).
    """
    N, Cin, H, W = x_nchw.shape
    Cmid = params["w1"].shape[0]
    eps = 1e-5
    identity = (stride == 1 and Cin == Cmid)
    if not identity:
        if option != "A":
            # TODO(synk): option 'B' shortcut (1x1 conv + BatchNorm) not implemented.
            raise NotImplementedError("option B shortcut not implemented")
        if stride != 2 or H % 2 or W % 2:
            raise ValueError("option-A shortcut requires stride=2 and even H, W "
                             "(stride=1 with in_planes != planes has no valid shape).")
        if 2 * (Cmid // 4) + Cin != Cmid:
            raise ValueError("option-A channel padding requires planes == 2*in_planes.")
    if fold_bn is None:
        # Fold BN scale into weights on the bf16 fast path; keep the f32-parity path
        # structurally identical to the PyTorch forward.
        fold_bn = jnp.dtype(matmul_dtype) != jnp.dtype(jnp.float32)

    Ho = (H - 1) // stride + 1
    Wo = (W - 1) // stride + 1
    K1 = W * Cin
    Nw = Wo * Cmid

    # ---- activation layout: NHWC with (W, C) fused into lanes.  No H-padding in HBM
    # (the kernel supplies the zero border rows); for stride 2 the rows are split into
    # even/odd phases so the kernel only takes unit-stride row slices.
    # NOTE: the bf16 path adds bf16 rounding to the residual (x is cast once here).
    x = jnp.transpose(x_nchw, (0, 2, 3, 1)).reshape(N, H, K1)
    if stride == 1:
        xph = x[:, None]                                         # (N, 1, Ho, K1)
    else:
        xph = jnp.stack([x[:, 0::2, :], x[:, 1::2, :]], axis=1)  # (N, 2, Ho, K1)
    xph = xph.astype(matmul_dtype)
    n_phase = xph.shape[1]

    # ---- eval-mode BN folded to scale/bias, tiled to the (j*Cmid + o) lane layout
    s1 = params["bn1_gamma"] / jnp.sqrt(params["bn1_var"] + eps)
    b1 = params["bn1_beta"] - params["bn1_mean"] * s1
    s2 = params["bn2_gamma"] / jnp.sqrt(params["bn2_var"] + eps)
    b2 = params["bn2_beta"] - params["bn2_mean"] * s2
    bn = jnp.stack([jnp.tile(s1, Wo), jnp.tile(b1, Wo),
                    jnp.tile(s2, Wo), jnp.tile(b2, Wo)]).astype(jnp.float32)  # (4, Nw)

    # ---- banded weights (dx taps + W zero padding folded in), dy bands stacked along
    # K so each conv is a single MXU matmul.  BN scale folded in on the fast path.
    w1b = _banded_conv_weight(params["w1"], stride, W, Wo)       # (3, K1, Nw) f32
    w2b = _banded_conv_weight(params["w2"], 1, Wo, Wo)           # (3, Nw, Nw) f32
    if fold_bn:
        w1b = w1b * jnp.tile(s1, Wo)[None, None, :]
        w2b = w2b * jnp.tile(s2, Wo)[None, None, :]
    w1b = w1b.reshape(3 * K1, Nw).astype(matmul_dtype)
    w2b = w2b.reshape(3 * Nw, Nw).astype(matmul_dtype)

    # ---- VMEM-aware batch block: fold B images into the matmul M dimension,
    # targeting ~512 output rows per grid step.
    cdt_bytes = jnp.dtype(matmul_dtype).itemsize
    out_bytes = jnp.dtype(out_dtype).itemsize
    row_align = 16 if out_bytes == 2 else 8
    try:
        vmem_cap = int(pltpu.get_tpu_info().vmem_capacity_bytes)   # per-core capacity
    except Exception:
        vmem_cap = 64 << 20                                        # v7x-safe fallback
    budget = max(16 << 20, min(48 << 20, vmem_cap // 2))

    n_weight_elems = 3 * K1 * Nw + 3 * Nw * Nw + (0 if identity else K1 * Nw)
    fixed_bytes = 2 * n_weight_elems * cdt_bytes + 2 * 4 * Nw * 4   # double-buffered
    row_bytes = (2 * n_phase * K1 * cdt_bytes       # double-buffered input block
                 + 3 * K1 * cdt_bytes               # fused conv1 LHS slab
                 + 4 * Nw * cdt_bytes               # h1 (cdt) + fused conv2 LHS slab
                 + 5 * Nw * 4                       # f32 temporaries
                 + 2 * Nw * out_bytes)              # double-buffered output block

    if batch_block is not None:
        B = batch_block
    else:
        B = _pick_batch_block(N, Ho, row_bytes, fixed_bytes, budget, row_align)
    if N % B or (B != N and (B * Ho) % row_align):
        raise ValueError(f"invalid batch block {B} for N={N}, Ho={Ho}")

    est_bytes = fixed_bytes + B * Ho * row_bytes
    vmem_limit = None
    if est_bytes > (12 << 20):   # above the smallest default scoped limit (v5e 16 MiB)
        vmem_limit = int(min(vmem_cap - (8 << 20), max(2 * est_bytes, 48 << 20)))

    kernel = functools.partial(_basic_block_kernel, B, stride, Ho, Nw,
                               identity, fold_bn, matmul_dtype)

    in_specs = [
        pl.BlockSpec((B, n_phase, Ho, K1), lambda n: (n, 0, 0, 0)),
        pl.BlockSpec((3 * K1, Nw), lambda n: (0, 0)),
        pl.BlockSpec((3 * Nw, Nw), lambda n: (0, 0)),
        pl.BlockSpec((4, Nw), lambda n: (0, 0)),
    ]
    operands = [xph, w1b, w2b, bn]
    if not identity:
        smat = _shortcut_placement(W, Cin, Wo, Cmid).astype(matmul_dtype)
        in_specs.append(pl.BlockSpec((K1, Nw), lambda n: (0, 0)))
        operands.append(smat)

    out2d = pl.pallas_call(
        kernel,
        out_shape=jax.ShapeDtypeStruct((N * Ho, Nw), out_dtype),
        grid_spec=pltpu.PrefetchScalarGridSpec(
            num_scalar_prefetch=0,
            grid=(N // B,),
            in_specs=in_specs,
            out_specs=pl.BlockSpec((B * Ho, Nw), lambda n: (n, 0)),
        ),
        compiler_params=pltpu.CompilerParams(
            dimension_semantics=("parallel",),
            vmem_limit_bytes=vmem_limit),
    )(*operands)

    # TODO(synk): when chaining blocks, keep the (N*Ho, Wo*C) lane-fused layout (and
    # out_dtype=matmul_dtype) between blocks; only convert at the network boundary.
    return jnp.transpose(out2d.reshape(N, Ho, Wo, Cmid), (0, 3, 1, 2))


def init_basic_block_params(key, in_planes, planes):
    """Deterministic synthetic parameters (shapes match nn.Conv2d / nn.BatchNorm2d)."""
    k0, k1, k2, k3 = jax.random.split(key, 4)
    return dict(
        w1=0.1 * jax.random.normal(k0, (planes, in_planes, 3, 3), jnp.float32),
        w2=0.1 * jax.random.normal(k1, (planes, planes, 3, 3), jnp.float32),
        bn1_gamma=1.0 + 0.1 * jax.random.normal(k2, (planes,), jnp.float32),
        bn1_beta=0.05 * jnp.arange(planes, dtype=jnp.float32),
        bn1_mean=0.01 * jnp.arange(planes, dtype=jnp.float32),
        bn1_var=0.9 * jnp.ones((planes,), jnp.float32),
        bn2_gamma=1.0 + 0.1 * jax.random.normal(k3, (planes,), jnp.float32),
        bn2_beta=-0.03 * jnp.arange(planes, dtype=jnp.float32),
        bn2_mean=-0.02 * jnp.arange(planes, dtype=jnp.float32),
        bn2_var=1.1 * jnp.ones((planes,), jnp.float32),
    )


def ref_basic_block(x, p, stride=1):
    """Pure-JAX (XLA) reference of the PyTorch forward, for numeric verification."""
    eps = 1e-5

    def bn(y, g, b, m, v):
        g, b, m, v = (t[None, :, None, None] for t in (g, b, m, v))
        return (y - m) / jnp.sqrt(v + eps) * g + b

    def conv(y, w, s):
        return lax.conv_general_dilated(
            y, w, (s, s), [(1, 1), (1, 1)],
            dimension_numbers=("NCHW", "OIHW", "NCHW"))

    out = jax.nn.relu(bn(conv(x, p["w1"], stride),
                         p["bn1_gamma"], p["bn1_beta"], p["bn1_mean"], p["bn1_var"]))
    out = bn(conv(out, p["w2"], 1),
             p["bn2_gamma"], p["bn2_beta"], p["bn2_mean"], p["bn2_var"])
    Cin, Cmid = x.shape[1], p["w1"].shape[0]
    if stride == 1 and Cin == Cmid:
        sc = x
    else:
        pd = Cmid // 4
        sc = jnp.pad(x[:, :, ::2, ::2], ((0, 0), (pd, pd), (0, 0), (0, 0)))
    return jax.nn.relu(out + sc)


if __name__ == "__main__":
    key = jax.random.PRNGKey(0)
    kx, kp1, kp2, kc = jax.random.split(key, 4)
    x = jax.random.normal(kx, (2, 4, 16, 16), jnp.float32)   # NCHW, like PyTorch

    # Block 1: stride=1, in_planes == planes -> identity shortcut
    p1 = init_basic_block_params(kp1, in_planes=4, planes=4)
    # Block 2: stride=2, channel expansion -> CIFAR option-A shortcut
    p2 = init_basic_block_params(kp2, in_planes=4, planes=8)

    r1 = ref_basic_block(x, p1, stride=1)
    r2 = ref_basic_block(x, p2, stride=2)

    # --- exact-structure check: f32 MXU operands, BN unfolded ---
    y1 = jax.block_until_ready(basic_block_forward(x, p1, stride=1,
                                                   matmul_dtype=jnp.float32))
    assert y1.shape == (2, 4, 16, 16)
    assert jnp.allclose(y1, r1, atol=1e-3, rtol=1e-3), "stride-1 block mismatch (f32)"

    y2 = jax.block_until_ready(basic_block_forward(x, p2, stride=2,
                                                   matmul_dtype=jnp.float32))
    assert y2.shape == (2, 8, 8, 8)
    assert jnp.allclose(y2, r2, atol=1e-3, rtol=1e-3), "stride-2 block mismatch (f32)"

    # --- default fast path: bf16 MXU operands, BN scale folded into the weights ---
    y1b = jax.block_until_ready(basic_block_forward(x, p1, stride=1))
    y2b = jax.block_until_ready(basic_block_forward(x, p2, stride=2))
    assert jnp.allclose(y1b, r1, atol=5e-2, rtol=5e-2), "stride-1 block mismatch (bf16)"
    assert jnp.allclose(y2b, r2, atol=5e-2, rtol=5e-2), "stride-2 block mismatch (bf16)"

    # --- lane-dense (Nw multiple of 128) shape close to a real CIFAR layer:
    #     exercises the larger-batch-block / VMEM-budget path.
    xc = jax.random.normal(kc, (8, 16, 32, 32), jnp.float32)
    pc = init_basic_block_params(jax.random.PRNGKey(7), in_planes=16, planes=16)
    rc = ref_basic_block(xc, pc, stride=1)
    yc = jax.block_until_ready(basic_block_forward(xc, pc, stride=1,
                                                   matmul_dtype=jnp.float32))
    assert yc.shape == (8, 16, 32, 32)
    assert jnp.allclose(yc, rc, atol=1e-3, rtol=1e-3), "CIFAR-scale block mismatch"

    print("KERNEL_OK")
</pallas_src>

<mosaic_0001>
module attributes {stable_mosaic.version = 11 : i64} {
  func.func @_basic_block_kernel(%arg0: i32, %arg1: memref<2x1x16x64xf32, #tpu.memory_space<vmem>>, %arg2: memref<192x64xf32, #tpu.memory_space<vmem>>, %arg3: memref<192x64xf32, #tpu.memory_space<vmem>>, %arg4: memref<4x64xf32, #tpu.memory_space<vmem>>, %arg5: memref<32x64xf32, #tpu.memory_space<vmem>>) attributes {dimension_semantics = [#tpu.dimension_semantics<parallel>], iteration_bounds = array<i64: 1>, scalar_prefetch = 0 : i64, scratch_operands = 0 : i64, tpu.core_type = #tpu.core_type<tc>, window_params = [{transform_indices = @transform_0, window_bounds = array<i64: 2, 1, 16, 64>}, {pipeline_mode = #tpu.pipeline_mode<synchronous>, transform_indices = @transform_1, window_bounds = array<i64: 192, 64>}, {pipeline_mode = #tpu.pipeline_mode<synchronous>, transform_indices = @transform_2, window_bounds = array<i64: 192, 64>}, {pipeline_mode = #tpu.pipeline_mode<synchronous>, transform_indices = @transform_3, window_bounds = array<i64: 4, 64>}, {transform_indices = @transform_4, window_bounds = array<i64: 32, 64>}]} {
    %cst = arith.constant 0.000000e+00 : f32
    %0 = vector.broadcast %cst : f32 to vector<2x1x64xf32>
    %c0 = arith.constant 0 : index
    %c0_0 = arith.constant 0 : index
    %c0_1 = arith.constant 0 : index
    %c0_2 = arith.constant 0 : index
    %1 = vector.load %arg1[%c0, %c0_0, %c0_1, %c0_2] : memref<2x1x16x64xf32, #tpu.memory_space<vmem>>, vector<2x1x16x64xf32>
    %2 = vector.shape_cast %1 : vector<2x1x16x64xf32> to vector<2x16x64xf32>
    %3 = vector.extract_strided_slice %2 {offsets = [0, 0, 0], sizes = [2, 15, 64], strides = [1, 1, 1]} : vector<2x16x64xf32> to vector<2x15x64xf32>
    %4 = tpu.concatenate %0, %3 in 1 : vector<2x1x64xf32>, vector<2x15x64xf32> -> vector<2x16x64xf32>
    %5 = vector.extract_strided_slice %2 {offsets = [0, 1, 0], sizes = [2, 15, 64], strides = [1, 1, 1]} : vector<2x16x64xf32> to vector<2x15x64xf32>
    %6 = tpu.concatenate %5, %0 in 1 : vector<2x15x64xf32>, vector<2x1x64xf32> -> vector<2x16x64xf32>
    %7 = tpu.concatenate %4, %2, %6 in 2 : vector<2x16x64xf32>, vector<2x16x64xf32>, vector<2x16x64xf32> -> vector<2x16x192xf32>
    %8 = vector.shape_cast %7 : vector<2x16x192xf32> to vector<32x192xf32>
    %c0_3 = arith.constant 0 : index
    %c0_4 = arith.constant 0 : index
    %9 = vector.load %arg2[%c0_3, %c0_4] : memref<192x64xf32, #tpu.memory_space<vmem>>, vector<192x64xf32>
    %cst_5 = arith.constant dense<0.000000e+00> : vector<32x64xf32>
    %10 = tpu.matmul %8, %9, %cst_5 {dimension_numbers = #tpu.dot_dimension_numbers<[1], [0], [0], [1], [0, 0, 1, 1], [], []>} : vector<32x192xf32>, vector<192x64xf32>, vector<32x64xf32> -> vector<32x64xf32>
    %c0_6 = arith.constant 0 : index
    %c0_7 = arith.constant 0 : index
    %11 = vector.load %arg4[%c0_6, %c0_7] : memref<4x64xf32, #tpu.memory_space<vmem>>, vector<1x64xf32>
    %12 = vector.broadcast %11 : vector<1x64xf32> to vector<32x64xf32>
    %13 = arith.mulf %10, %12 : vector<32x64xf32>
    %c1 = arith.constant 1 : index
    %c0_8 = arith.constant 0 : index
    %14 = vector.load %arg4[%c1, %c0_8] : memref<4x64xf32, #tpu.memory_space<vmem>>, vector<1x64xf32>
    %15 = vector.broadcast %14 : vector<1x64xf32> to vector<32x64xf32>
    %16 = arith.addf %13, %15 : vector<32x64xf32>
    %cst_9 = arith.constant 0.000000e+00 : f32
    %17 = vector.broadcast %cst_9 : f32 to vector<32x64xf32>
    %18 = arith.maximumf %16, %17 : vector<32x64xf32>
    %19 = vector.shape_cast %18 : vector<32x64xf32> to vector<2x16x64xf32>
    %cst_10 = arith.constant 0.000000e+00 : f32
    %20 = vector.broadcast %cst_10 : f32 to vector<2x1x64xf32>
    %21 = vector.extract_strided_slice %19 {offsets = [0, 0, 0], sizes = [2, 15, 64], strides = [1, 1, 1]} : vector<2x16x64xf32> to vector<2x15x64xf32>
    %22 = tpu.concatenate %20, %21 in 1 : vector<2x1x64xf32>, vector<2x15x64xf32> -> vector<2x16x64xf32>
    %23 = vector.extract_strided_slice %19 {offsets = [0, 1, 0], sizes = [2, 15, 64], strides = [1, 1, 1]} : vector<2x16x64xf32> to vector<2x15x64xf32>
    %24 = tpu.concatenate %23, %20 in 1 : vector<2x15x64xf32>, vector<2x1x64xf32> -> vector<2x16x64xf32>
    %25 = tpu.concatenate %22, %19, %24 in 2 : vector<2x16x64xf32>, vector<2x16x64xf32>, vector<2x16x64xf32> -> vector<2x16x192xf32>
    %26 = vector.shape_cast %25 : vector<2x16x192xf32> to vector<32x192xf32>
    %c0_11 = arith.constant 0 : index
    %c0_12 = arith.constant 0 : index
    %27 = vector.load %arg3[%c0_11, %c0_12] : memref<192x64xf32, #tpu.memory_space<vmem>>, vector<192x64xf32>
    %cst_13 = arith.constant dense<0.000000e+00> : vector<32x64xf32>
    %28 = tpu.matmul %26, %27, %cst_13 {dimension_numbers = #tpu.dot_dimension_numbers<[1], [0], [0], [1], [0, 0, 1, 1], [], []>} : vector<32x192xf32>, vector<192x64xf32>, vector<32x64xf32> -> vector<32x64xf32>
    %c2 = arith.constant 2 : index
    %c0_14 = arith.constant 0 : index
    %29 = vector.load %arg4[%c2, %c0_14] : memref<4x64xf32, #tpu.memory_space<vmem>>, vector<1x64xf32>
    %30 = vector.broadcast %29 : vector<1x64xf32> to vector<32x64xf32>
    %31 = arith.mulf %28, %30 : vector<32x64xf32>
    %c3 = arith.constant 3 : index
    %c0_15 = arith.constant 0 : index
    %32 = vector.load %arg4[%c3, %c0_15] : memref<4x64xf32, #tpu.memory_space<vmem>>, vector<1x64xf32>
    %33 = vector.broadcast %32 : vector<1x64xf32> to vector<32x64xf32>
    %34 = arith.addf %31, %33 : vector<32x64xf32>
    %35 = vector.shape_cast %2 : vector<2x16x64xf32> to vector<32x64xf32>
    %36 = arith.addf %34, %35 : vector<32x64xf32>
    %cst_16 = arith.constant 0.000000e+00 : f32
    %37 = vector.broadcast %cst_16 : f32 to vector<32x64xf32>
    %38 = arith.maximumf %36, %37 : vector<32x64xf32>
    %c0_17 = arith.constant 0 : index
    %c0_18 = arith.constant 0 : index
    %39 = vector.load %arg5[%c0_17, %c0_18] : memref<32x64xf32, #tpu.memory_space<vmem>>, vector<32x64xf32>
    tpu.vector_store %arg5[%c0_17, %c0_18], %38 {strides = array<i32>} : memref<32x64xf32, #tpu.memory_space<vmem>>, vector<32x64xf32>,
    return
  }
  func.func @transform_0(%arg0: i32) -> (i32, i32, i32, i32) {
    %c0_i32 = arith.constant 0 : i32
    %c0_i32_0 = arith.constant 0 : i32
    %c0_i32_1 = arith.constant 0 : i32
    %c0_i32_2 = arith.constant 0 : i32
    return %arg0, %c0_i32, %c0_i32_0, %c0_i32_1 : i32, i32, i32, i32
  }
  func.func @transform_1(%arg0: i32) -> (i32, i32) {
    %c0_i32 = arith.constant 0 : i32
    %c0_i32_0 = arith.constant 0 : i32
    %c0_i32_1 = arith.constant 0 : i32
    return %c0_i32, %c0_i32_0 : i32, i32
  }
  func.func @transform_2(%arg0: i32) -> (i32, i32) {
    %c0_i32 = arith.constant 0 : i32
    %c0_i32_0 = arith.constant 0 : i32
    %c0_i32_1 = arith.constant 0 : i32
    return %c0_i32, %c0_i32_0 : i32, i32
  }
  func.func @transform_3(%arg0: i32) -> (i32, i32) {
    %c0_i32 = arith.constant 0 : i32
    %c0_i32_0 = arith.constant 0 : i32
    %c0_i32_1 = arith.constant 0 : i32
    return %c0_i32, %c0_i32_0 : i32, i32
  }
  func.func @transform_4(%arg0: i32) -> (i32, i32) {
    %c0_i32 = arith.constant 0 : i32
    %c0_i32_0 = arith.constant 0 : i32
    return %arg0, %c0_i32 : i32, i32
  }
}

</mosaic_0001>

<llo_original>
// kernel: tpu_custom_call.1
$region0: #{tpu_custom_call.1}
  #allocation0 [shape = 'u32[]', space=smem, size = 0x4, offset = 0x4, fixed_abs, tag = 'smem constant byte address 0x4 - core index']
  #allocation1 [shape = 'u32[144,128]{1,0:T(1,128)}', space=vmem, size = 0x12000, scoped, tag = 'internal scratch']
  %s0 = inlined_call_operand.vmem [shape: f32[2,1,16,64], index: 0, kind: input, shape index: {}]
  %s1 = inlined_call_operand.vmem [shape: f32[192,64], index: 1, kind: input, shape index: {}]
  %s2 = inlined_call_operand.vmem [shape: f32[192,64], index: 2, kind: input, shape index: {}]
  %s3 = inlined_call_operand.vmem [shape: f32[4,64], index: 3, kind: input, shape index: {}]
  %s4 = inlined_call_operand.hbm [shape: f32[32,64], index: 4, kind: output, shape index: {}]
  %s5 = sld [smem:[#allocation0]]
  $region26: #{tpu_custom_call.1} parent=0
    _
  %s7 = ssub.s32 1, %s5
  %s8 = scalar_select 0, %s7, %s5
  $region1: #{tpu_custom_call.1} parent=0
    #allocation2 [shape = 'u8[16384]{0}', space=vmem, size = 0x4000, scoped, tag = 'output window, operand 0, single buffered']
    #allocation3 [shape = 's32[1]{0}', space=sflag, size = 0x4, scoped, tag = 'scoped memory for tpu_custom_call.1']
    %9 = vsyncpa [#allocation3], 0
    // Predicated region
    $region2: #{tpu_custom_call.1} parent=1 // pred_check
      _
    $region3: #{tpu_custom_call.1} parent=1 // pred_check_branch
      %11 = sbr.rel (0) target = $region5
    $region4: #{tpu_custom_call.1} parent=1 // pred_region
      _
    $region5: #{tpu_custom_call.1} parent=1 // pred_fallthru
      _
    // Predicated region
    $region6: #{tpu_custom_call.1} parent=1 // pred_check
      _
    $region7: #{tpu_custom_call.1} parent=1 // pred_check_branch
      %13 = sbr.rel (0) target = $region9
    $region8: #{tpu_custom_call.1} parent=1 // pred_region
      _
    $region9: #{tpu_custom_call.1} parent=1 // pred_fallthru
      _
    // Predicated region
    $region10: #{tpu_custom_call.1} parent=1 // pred_check
      _
    $region11: #{tpu_custom_call.1} parent=1 // pred_check_branch
      %15 = sbr.rel (0) target = $region13
    $region12: #{tpu_custom_call.1} parent=1 // pred_region
      _
    $region13: #{tpu_custom_call.1} parent=1 // pred_fallthru
      _
    // Predicated region
    $region14: #{tpu_custom_call.1} parent=1 // pred_check
      _
    $region15: #{tpu_custom_call.1} parent=1 // pred_check_branch
      %17 = sbr.rel (0) target = $region17
    $region16: #{tpu_custom_call.1} parent=1 // pred_region
      _
    $region17: #{tpu_custom_call.1} parent=1 // pred_fallthru
      _
    %v18 = vld [vmem:[%s0] sm:$0xff]
    %v19 = vld [vmem:[%s0 + $0x8] sm:$0xff]
    %v20 = vld [vmem:[%s0 + $0x10] sm:$0xff]
    %v21 = vld [vmem:[%s0 + $0x18] sm:$0xff]
    %vm26 = vcmask 1040384
    %v27 = vrot.slane %v18, 7
    %v28 = vrot.slane %v19, 7
    %v29 = vsel %vm26, %v27, %v28
    %v30 = vrot.slane %v20, 7
    %v31 = vrot.slane %v21, 7
    %v32 = vsel %vm26, %v30, %v31
    %v37 = vsel %vm26, 0.0, %v27
    %v38 = vsel %vm26, 0.0, %v30
    %vm39 = vcmask 1046528
    %v40 = vrot.slane %v18, 1
    %v41 = vrot.slane %v19, 1
    %v42 = vsel %vm39, %v40, %v41
    %v43 = vrot.slane %v20, 1
    %v44 = vrot.slane %v21, 1
    %v45 = vsel %vm39, %v43, %v44
    %v48 = vsel %vm39, %v41, 0.0
    %v49 = vsel %vm39, %v44, 0.0
    %50 = vrot.lane.b32.xlu0 %v18, 64
    %v51 = vpop.permute.xlu0 %50
    %52 = vrot.lane.b32.xlu0 %v19, 64
    %v53 = vpop.permute.xlu0 %52
    %54 = vrot.lane.b32.xlu0 %v20, 64
    %v55 = vpop.permute.xlu0 %54
    %56 = vrot.lane.b32.xlu0 %v21, 64
    %v57 = vpop.permute.xlu0 %56
    %vm62 = vcmask 523264
    %v63 = vsel %vm62, %v37, %v51
    %v64 = vsel %vm62, %v29, %v53
    %v65 = vsel %vm62, %v38, %v55
    %v66 = vsel %vm62, %v32, %v57
    %v67 = vld [vmem:[%s1] sm:$0xff]
    %v68 = vld [vmem:[%s1 + $0x8] sm:$0xff]
    %v69 = vld [vmem:[%s1 + $0x10] sm:$0xff]
    %v70 = vld [vmem:[%s1 + $0x18] sm:$0xff]
    %v71 = vld [vmem:[%s1 + $0x20] sm:$0xff]
    %v72 = vld [vmem:[%s1 + $0x28] sm:$0xff]
    %v73 = vld [vmem:[%s1 + $0x30] sm:$0xff]
    %v74 = vld [vmem:[%s1 + $0x38] sm:$0xff]
    %v75 = vld [vmem:[%s1 + $0x40] sm:$0xff]
    %v76 = vld [vmem:[%s1 + $0x48] sm:$0xff]
    %v77 = vld [vmem:[%s1 + $0x50] sm:$0xff]
    %v78 = vld [vmem:[%s1 + $0x58] sm:$0xff]
    %v79 = vld [vmem:[%s1 + $0x60] sm:$0xff]
    %v80 = vld [vmem:[%s1 + $0x68] sm:$0xff]
    %v81 = vld [vmem:[%s1 + $0x70] sm:$0xff]
    %v82 = vld [vmem:[%s1 + $0x78] sm:$0xff]
    %v83 = vld [vmem:[%s1 + $0x80] sm:$0xff]
    %v84 = vld [vmem:[%s1 + $0x88] sm:$0xff]
    %v85 = vld [vmem:[%s1 + $0x90] sm:$0xff]
    %v86 = vld [vmem:[%s1 + $0x98] sm:$0xff]
    %v87 = vld [vmem:[%s1 + $0xa0] sm:$0xff]
    %v88 = vld [vmem:[%s1 + $0xa8] sm:$0xff]
    %v89 = vld [vmem:[%s1 + $0xb0] sm:$0xff]
    %v90 = vld [vmem:[%s1 + $0xb8] sm:$0xff]
    %v91 = vsel %vm62, %v42, 0
    %v94 = vsel %vm62, %v48, 0
    %v96 = vsel %vm62, %v45, 0
    %v99 = vsel %vm62, %v49, 0
    %101 = vmatprep.subr.mxu0 0.0
    %102 = vmatpush1.msra.mxu0 %v67
    %103 = vmatprep.subr.mxu0 0.0
    %104 = vmatpush1.msra.mxu0 %v68
    %105 = vmatprep.subr.mxu0 0.0
    %106 = vmatpush1.msra.mxu0 %v69
    %107 = vmatprep.subr.mxu0 0.0
    %108 = vmatpush1.msra.mxu0 %v70
    %109 = vmatprep.subr.mxu0 0.0
    %110 = vmatpush1.msra.mxu0 %v71
    %111 = vmatprep.subr.mxu0 0.0
    %112 = vmatpush1.msra.mxu0 %v72
    %113 = vmatprep.subr.mxu0 0.0
    %114 = vmatpush1.msra.mxu0 %v73
    %115 = vmatprep.subr.mxu0 0.0
    %116 = vmatpush1.msra.mxu0 %v74
    %117 = vmatprep.subr.mxu0 0.0
    %118 = vmatpush1.msra.mxu0 %v75
    %119 = vmatprep.subr.mxu0 0.0
    %120 = vmatpush1.msra.mxu0 %v76
    %121 = vmatprep.subr.mxu0 0.0
    %122 = vmatpush1.msra.mxu0 %v77
    %123 = vmatprep.subr.mxu0 0.0
    %124 = vmatpush1.msra.mxu0 %v78
    %125 = vmatprep.subr.mxu0 0.0
    %126 = vmatpush1.msra.mxu0 %v79
    %127 = vmatprep.subr.mxu0 0.0
    %128 = vmatpush1.msra.mxu0 %v80
    %129 = vmatprep.subr.mxu0 0.0
    %130 = vmatpush1.msra.mxu0 %v81
    %131 = vmatprep.subr.mxu0 0.0
    %132 = vmatpush1.msra.mxu0 %v82
    %133 = vmatprep.subr.mxu0 0.0
    %134 = vmatpush1.msra.mxu0 %v83
    %135 = vmatprep.subr.mxu0 0.0
    %136 = vmatpush1.msra.mxu0 %v84
    %137 = vmatprep.subr.mxu0 0.0
    %138 = vmatpush1.msra.mxu0 %v85
    %139 = vmatprep.subr.mxu0 0.0
    %140 = vmatpush1.msra.mxu0 %v86
    %141 = vmatprep.subr.mxu0 0.0
    %142 = vmatpush1.msra.mxu0 %v87
    %143 = vmatprep.subr.mxu0 0.0
    %144 = vmatpush1.msra.mxu0 %v88
    %145 = vmatprep.subr.mxu0 0.0
    %146 = vmatpush1.msra.mxu0 %v89
    %147 = vmatprep.subr.mxu0 0.0
    %148 = vmatpush1.msra.mxu0 %v90
    %149 = vmatprep.subr.mxu0 0.0
    %150 = vmatpush1.msra.mxu0 0.0
    %151 = vmatprep.subr.mxu0 0.0
    %152 = vmatpush1.msra.mxu0 0.0
    %153 = vmatprep.subr.mxu0 0.0
    %154 = vmatpush1.msra.mxu0 0.0
    %155 = vmatprep.subr.mxu0 0.0
    %156 = vmatpush1.msra.mxu0 0.0
    %157 = vmatprep.subr.mxu0 0.0
    %158 = vmatpush1.msra.mxu0 0.0
    %159 = vmatprep.subr.mxu0 0.0
    %160 = vmatpush1.msra.mxu0 0.0
    %161 = vmatprep.subr.mxu0 0.0
    %162 = vmatpush1.msra.mxu0 0.0
    %163 = vmatprep.subr.mxu0 0.0
    %164 = vmatpush1.msra.mxu0 0.0
    %165 = vmatprep.mubr.f32.mxu0 %v91
    %166 = vmatmul.mubr.f32.gmra.mrb[0].mxu0 %v63
    %v167 = vpop.f32.mrb[0].mxu0
    %v168 = vadd.f32 0.0, %v167
    %v169 = vpop.f32.mrb[0].mxu0
    %170 = vmatprep.mubr.f32.mxu0 %v94
    %171 = vmatmul.mubr.f32.gmra.mrb[0].mxu0 %v64
    %v172 = vpop.f32.mrb[0].mxu0
    %v173 = vadd.f32 0.0, %v172
    %v174 = vpop.f32.mrb[0].mxu0
    %175 = vmatprep.mubr.f32.mxu0 %v96
    %176 = vmatmul.mubr.f32.gmra.mrb[0].mxu0 %v65
    %v177 = vpop.f32.mrb[0].mxu0
    %v178 = vadd.f32 0.0, %v177
    %v179 = vpop.f32.mrb[0].mxu0
    %180 = vmatprep.mubr.f32.mxu0 %v99
    %181 = vmatmul.mubr.f32.gmra.mrb[0].mxu0 %v66
    %v182 = vpop.f32.mrb[0].mxu0
    %v183 = vadd.f32 0.0, %v182
    %v184 = vpop.f32.mrb[0].mxu0
    %185 = vdwg.mxu0
    %v186 = vld [vmem:[%s3] sm:$0x1]
    %v187 = vlaneseq
    %v188 = vshrl.u32 %v187, 7
    %v189 = vsub.s32 0, %v188
    %v190 = vrot.slane %v186, %v189
    %v191 = vmul.f32 %v168, %v190
    %v192 = vmul.f32 %v173, %v190
    %v193 = vmul.f32 %v178, %v190
    %v194 = vmul.f32 %v183, %v190
    %v195 = vld [vmem:[%s3 + $0x1] sm:$0x1]
    %v196 = vlaneseq
    %v197 = vshrl.u32 %v196, 7
    %v198 = vsub.s32 0, %v197
    %v199 = vrot.slane %v195, %v198
    %v200 = vadd.f32 %v191, %v199
    %v201 = vadd.f32 %v192, %v199
    %v202 = vadd.f32 %v193, %v199
    %v203 = vadd.f32 %v194, %v199
    %v204 = vmax.f32 %v200, 0.0
    %v205 = vmax.f32 %v201, 0.0
    %v206 = vmax.f32 %v202, 0.0
    %v207 = vmax.f32 %v203, 0.0
    %v212 = vrot.slane %v204, 7
    %v213 = vrot.slane %v205, 7
    %v214 = vsel %vm26, %v212, %v213
    %v215 = vrot.slane %v206, 7
    %v216 = vrot.slane %v207, 7
    %v217 = vsel %vm26, %v215, %v216
    %v222 = vsel %vm26, 0.0, %v212
    %v223 = vsel %vm26, 0.0, %v215
    %v224 = vrot.slane %v204, 1
    %v225 = vrot.slane %v205, 1
    %v226 = vsel %vm39, %v224, %v225
    %v227 = vrot.slane %v206, 1
    %v228 = vrot.slane %v207, 1
    %v229 = vsel %vm39, %v227, %v228
    %v232 = vsel %vm39, %v225, 0.0
    %v233 = vsel %vm39, %v228, 0.0
    %234 = vrot.lane.b32.xlu0 %v204, 64
    %v235 = vpop.permute.xlu0 %234
    %236 = vrot.lane.b32.xlu0 %v205, 64
    %v237 = vpop.permute.xlu0 %236
    %238 = vrot.lane.b32.xlu0 %v206, 64
    %v239 = vpop.permute.xlu0 %238
    %240 = vrot.lane.b32.xlu0 %v207, 64
    %v241 = vpop.permute.xlu0 %240
    %v246 = vsel %vm62, %v222, %v235
    %v247 = vsel %vm62, %v214, %v237
    %v248 = vsel %vm62, %v223, %v239
    %v249 = vsel %vm62, %v217, %v241
    %v250 = vld [vmem:[%s2] sm:$0xff]
    %v251 = vld [vmem:[%s2 + $0x8] sm:$0xff]
    %v252 = vld [vmem:[%s2 + $0x10] sm:$0xff]
    %v253 = vld [vmem:[%s2 + $0x18] sm:$0xff]
    %v254 = vld [vmem:[%s2 + $0x20] sm:$0xff]
    %v255 = vld [vmem:[%s2 + $0x28] sm:$0xff]
    %v256 = vld [vmem:[%s2 + $0x30] sm:$0xff]
    %v257 = vld [vmem:[%s2 + $0x38] sm:$0xff]
    %v258 = vld [vmem:[%s2 + $0x40] sm:$0xff]
    %v259 = vld [vmem:[%s2 + $0x48] sm:$0xff]
    %v260 = vld [vmem:[%s2 + $0x50] sm:$0xff]
    %v261 = vld [vmem:[%s2 + $0x58] sm:$0xff]
    %v262 = vld [vmem:[%s2 + $0x60] sm:$0xff]
    %v263 = vld [vmem:[%s2 + $0x68] sm:$0xff]
    %v264 = vld [vmem:[%s2 + $0x70] sm:$0xff]
    %v265 = vld [vmem:[%s2 + $0x78] sm:$0xff]
    %v266 = vld [vmem:[%s2 + $0x80] sm:$0xff]
    %v267 = vld [vmem:[%s2 + $0x88] sm:$0xff]
    %v268 = vld [vmem:[%s2 + $0x90] sm:$0xff]
    %v269 = vld [vmem:[%s2 + $0x98] sm:$0xff]
    %v270 = vld [vmem:[%s2 + $0xa0] sm:$0xff]
    %v271 = vld [vmem:[%s2 + $0xa8] sm:$0xff]
    %v272 = vld [vmem:[%s2 + $0xb0] sm:$0xff]
    %v273 = vld [vmem:[%s2 + $0xb8] sm:$0xff]
    %v274 = vsel %vm62, %v226, 0
    %v277 = vsel %vm62, %v232, 0
    %v279 = vsel %vm62, %v229, 0
    %v282 = vsel %vm62, %v233, 0
    %284 = vmatprep.subr.mxu0 0.0
    %285 = vmatpush1.msra.mxu0 %v250
    %286 = vmatprep.subr.mxu0 0.0
    %287 = vmatpush1.msra.mxu0 %v251
    %288 = vmatprep.subr.mxu0 0.0
    %289 = vmatpush1.msra.mxu0 %v252
    %290 = vmatprep.subr.mxu0 0.0
    %291 = vmatpush1.msra.mxu0 %v253
    %292 = vmatprep.subr.mxu0 0.0
    %293 = vmatpush1.msra.mxu0 %v254
    %294 = vmatprep.subr.mxu0 0.0
    %295 = vmatpush1.msra.mxu0 %v255
    %296 = vmatprep.subr.mxu0 0.0
    %297 = vmatpush1.msra.mxu0 %v256
    %298 = vmatprep.subr.mxu0 0.0
    %299 = vmatpush1.msra.mxu0 %v257
    %300 = vmatprep.subr.mxu0 0.0
    %301 = vmatpush1.msra.mxu0 %v258
    %302 = vmatprep.subr.mxu0 0.0
    %303 = vmatpush1.msra.mxu0 %v259
    %304 = vmatprep.subr.mxu0 0.0
    %305 = vmatpush1.msra.mxu0 %v260
    %306 = vmatprep.subr.mxu0 0.0
    %307 = vmatpush1.msra.mxu0 %v261
    %308 = vmatprep.subr.mxu0 0.0
    %309 = vmatpush1.msra.mxu0 %v262
    %310 = vmatprep.subr.mxu0 0.0
    %311 = vmatpush1.msra.mxu0 %v263
    %312 = vmatprep.subr.mxu0 0.0
    %313 = vmatpush1.msra.mxu0 %v264
    %314 = vmatprep.subr.mxu0 0.0
    %315 = vmatpush1.msra.mxu0 %v265
    %316 = vmatprep.subr.mxu0 0.0
    %317 = vmatpush1.msra.mxu0 %v266
    %318 = vmatprep.subr.mxu0 0.0
    %319 = vmatpush1.msra.mxu0 %v267
    %320 = vmatprep.subr.mxu0 0.0
    %321 = vmatpush1.msra.mxu0 %v268
    %322 = vmatprep.subr.mxu0 0.0
    %323 = vmatpush1.msra.mxu0 %v269
    %324 = vmatprep.subr.mxu0 0.0
    %325 = vmatpush1.msra.mxu0 %v270
    %326 = vmatprep.subr.mxu0 0.0
    %327 = vmatpush1.msra.mxu0 %v271
    %328 = vmatprep.subr.mxu0 0.0
    %329 = vmatpush1.msra.mxu0 %v272
    %330 = vmatprep.subr.mxu0 0.0
    %331 = vmatpush1.msra.mxu0 %v273
    %332 = vmatprep.subr.mxu0 0.0
    %333 = vmatpush1.msra.mxu0 0.0
    %334 = vmatprep.subr.mxu0 0.0
    %335 = vmatpush1.msra.mxu0 0.0
    %336 = vmatprep.subr.mxu0 0.0
    %337 = vmatpush1.msra.mxu0 0.0
    %338 = vmatprep.subr.mxu0 0.0
    %339 = vmatpush1.msra.mxu0 0.0
    %340 = vmatprep.subr.mxu0 0.0
    %341 = vmatpush1.msra.mxu0 0.0
    %342 = vmatprep.subr.mxu0 0.0
    %343 = vmatpush1.msra.mxu0 0.0
    %344 = vmatprep.subr.mxu0 0.0
    %345 = vmatpush1.msra.mxu0 0.0
    %346 = vmatprep.subr.mxu0 0.0
    %347 = vmatpush1.msra.mxu0 0.0
    %348 = vmatprep.mubr.f32.mxu0 %v274
    %349 = vmatmul.mubr.f32.gmra.mrb[0].mxu0 %v246
    %v350 = vpop.f32.mrb[0].mxu0
    %v351 = vadd.f32 0.0, %v350
    %v352 = vpop.f32.mrb[0].mxu0
    %353 = vmatprep.mubr.f32.mxu0 %v277
    %354 = vmatmul.mubr.f32.gmra.mrb[0].mxu0 %v247
    %v355 = vpop.f32.mrb[0].mxu0
    %v356 = vadd.f32 0.0, %v355
    %v357 = vpop.f32.mrb[0].mxu0
    %358 = vmatprep.mubr.f32.mxu0 %v279
    %359 = vmatmul.mubr.f32.gmra.mrb[0].mxu0 %v248
    %v360 = vpop.f32.mrb[0].mxu0
    %v361 = vadd.f32 0.0, %v360
    %v362 = vpop.f32.mrb[0].mxu0
    %363 = vmatprep.mubr.f32.mxu0 %v282
    %364 = vmatmul.mubr.f32.gmra.mrb[0].mxu0 %v249
    %v365 = vpop.f32.mrb[0].mxu0
    %v366 = vadd.f32 0.0, %v365
    %v367 = vpop.f32.mrb[0].mxu0
    %368 = vdwg.mxu0
    %v369 = vld [vmem:[%s3 + $0x2] sm:$0x1]
    %v370 = vlaneseq
    %v371 = vshrl.u32 %v370, 7
    %v372 = vsub.s32 0, %v371
    %v373 = vrot.slane %v369, %v372
    %v374 = vmul.f32 %v351, %v373
    %v375 = vmul.f32 %v356, %v373
    %v376 = vmul.f32 %v361, %v373
    %v377 = vmul.f32 %v366, %v373
    %v378 = vld [vmem:[%s3 + $0x3] sm:$0x1]
    %v379 = vlaneseq
    %v380 = vshrl.u32 %v379, 7
    %v381 = vsub.s32 0, %v380
    %v382 = vrot.slane %v378, %v381
    %v383 = vadd.f32 %v374, %v382
    %v384 = vadd.f32 %v375, %v382
    %v385 = vadd.f32 %v376, %v382
    %v386 = vadd.f32 %v377, %v382
    %v387 = vadd.f32 %v383, %v18
    %v388 = vadd.f32 %v384, %v19
    %v389 = vadd.f32 %v385, %v20
    %v390 = vadd.f32 %v386, %v21
    %v391 = vmax.f32 %v387, 0.0
    %v392 = vmax.f32 %v388, 0.0
    %v393 = vmax.f32 %v389, 0.0
    %v394 = vmax.f32 %v390, 0.0
    %395 = vst.msk [vmem:[#allocation2] sm:$0xff] %vm62, %v391
    %396 = vst.msk [vmem:[#allocation2 + $0x8] sm:$0xff] %vm62, %v392
    %397 = vst.msk [vmem:[#allocation2 + $0x10] sm:$0xff] %vm62, %v393
    %398 = vst.msk [vmem:[#allocation2 + $0x18] sm:$0xff] %vm62, %v394
    // Predicated region
    $region18: #{tpu_custom_call.1} parent=1 // pred_check
      _
    $region19: #{tpu_custom_call.1} parent=1 // pred_check_branch
      %400 = sbr.rel (0) target = $region21
    $region20: #{tpu_custom_call.1} parent=1 // pred_region
      %s402 = ssub.s32 512, 512
      %403 = vsyncadd [#allocation3], %s402
      %s404 = sshll.u32 [#allocation2], 4
      %s405 = int_to_ptr.vmem [resolvable:$true] %s404
      %410 = dma.vmem_to_hbm [thread:$0]  %s405, 512, %s4, [#allocation3], 128, 128, 8
    $region21: #{tpu_custom_call.1} parent=1 // pred_fallthru
      _
    // Predicated region
    $region22: #{tpu_custom_call.1} parent=1 // pred_check
      _
    $region23: #{tpu_custom_call.1} parent=1 // pred_check_branch
      %412 = sbr.rel (0) target = $region25
    $region24: #{tpu_custom_call.1} parent=1 // pred_region
      %413 = dma.done [#allocation3], 512
    $region25: #{tpu_custom_call.1} parent=1 // pred_fallthru
      _
    %414 = vsyncpa [#allocation3], 1

</llo_original>
